<compile_context>
chip_gen: v5e
topology: v5e:2x2
jax: 0.10.0
libtpu: 0.0.40
codegen_flags: <defaults>
</compile_context>

<pallas_src>
import functools

import jax
import jax.numpy as jnp
from jax import lax
from jax.experimental import pallas as pl
from jax.experimental.pallas import tpu as pltpu

_LANE = 128      # lane width (last dim)
_SUBLANE = 8     # sublane height (second-to-last dim)


def _round_up(n, m):
    return ((n + m - 1) // m) * m


def _pad2d(a, rows, cols):
    r, c = a.shape
    return jnp.pad(a, ((0, rows - r), (0, cols - c)))


def _softplus(s):
    # Numerically stable log(1 + exp(s)) == self.rho(sigma) from the module.
    # Only exp/log/abs/max/add -> all VPU/EUP ops, no overflow for large s.
    return jnp.maximum(s, 0.0) + jnp.log(1.0 + jnp.exp(-jnp.abs(s)))


def _fused_bnn_kernel(*refs, n_linear):
    """Fused forward: sample weights per layer, matmul, bias, tanh (except last)."""
    x_ref = refs[0]
    o_ref = refs[-1]
    layer_refs = refs[1:-1]          # 6 refs per linear layer

    x = x_ref[...].astype(jnp.float32)
    for j in range(n_linear):
        wm, ws, zw, bm, bs, zb = layer_refs[6 * j: 6 * (j + 1)]
        # Reparameterized sample of weights / bias (VPU + EUP work).
        A = wm[...] + _softplus(ws[...]) * zw[...]      # (out_pad, in_pad)
        b = bm[...] + _softplus(bs[...]) * zb[...]      # (1, out_pad)
        # x @ A.T without a transpose: contract last dim of x with last dim of A.
        y = lax.dot_general(
            x, A,
            dimension_numbers=(((1,), (1,)), ((), ())),
            preferred_element_type=jnp.float32,
        ) + b
        x = jnp.tanh(y) if j < n_linear - 1 else y      # Tanh between linears
    o_ref[...] = x.astype(o_ref.dtype)


def sequential_gaussian_bnn_forward(x, params):
    """Forward pass of SequentialGaussianBNN (Linear->Tanh->...->Linear) as one
    fused Pallas kernel. z_* are the realized standard normals (resampling is
    done outside, as in the module's `resample_weights` path)."""
    n_linear = len(params)
    batch, in_features = x.shape
    out_features = params[-1]["w_mean"].shape[0]

    # Lane-dense padded sizes.
    b_pad = _round_up(batch, _SUBLANE)
    dims = [in_features] + [p["w_mean"].shape[0] for p in params]
    dims_pad = [_round_up(d, _LANE) for d in dims]

    x_pad = _pad2d(x, b_pad, dims_pad[0])
    args = [x_pad]
    in_specs = [pl.BlockSpec((b_pad, dims_pad[0]), lambda: (0, 0))]

    for j, p in enumerate(params):
        din, dout = dims_pad[j], dims_pad[j + 1]
        args += [
            _pad2d(p["w_mean"], dout, din),   # zero pad -> padded A rows/cols == 0
            _pad2d(p["w_std"], dout, din),
            _pad2d(p["z_w"], dout, din),      # zero pad -> kills rho(pad) term
            _pad2d(p["b_mean"], 1, dout),
            _pad2d(p["b_std"], 1, dout),
            _pad2d(p["z_b"], 1, dout),
        ]
        in_specs += [pl.BlockSpec((dout, din), lambda: (0, 0))] * 3
        in_specs += [pl.BlockSpec((1, dout), lambda: (0, 0))] * 3

    dout_last = dims_pad[-1]
    out_spec = pl.BlockSpec((b_pad, dout_last), lambda: (0, 0))

    # Advisory cost estimate for the XLA scheduler.
    flops = sum(2 * b_pad * dims_pad[j] * dims_pad[j + 1] for j in range(n_linear))
    transcendentals = sum(2 * (dims_pad[j] * dims_pad[j + 1] + dims_pad[j + 1])
                          for j in range(n_linear))
    transcendentals += sum(b_pad * dims_pad[j + 1] for j in range(n_linear - 1))
    bytes_accessed = sum(int(a.size) * 4 for a in args) + b_pad * dout_last * 4

    kernel = functools.partial(_fused_bnn_kernel, n_linear=n_linear)
    y_pad = pl.pallas_call(
        kernel,
        out_shape=jax.ShapeDtypeStruct((b_pad, dout_last), x.dtype),
        grid=(),
        in_specs=in_specs,
        out_specs=out_spec,
        cost_estimate=pl.CostEstimate(
            flops=flops,
            transcendentals=transcendentals,
            bytes_accessed=bytes_accessed,
        ),
        compiler_params=pltpu.CompilerParams(vmem_limit_bytes=32 * 1024 * 1024),
    )(*args)

    # Slice back to the true (batch, out_features) result.
    return y_pad[:batch, :out_features]


def init_bnn_params(key, layer_dims):
    """Deterministic parameter init mimicking the module's __init__.

    Returns a list of per-linear-layer dicts with:
      w_mean, w_std, z_w : (out, in)
      b_mean, b_std, z_b : (1, out)
    """
    params = []
    for (fan_in, fan_out) in layer_dims:
        key, k1, k2, k3, k4, k5, k6 = jax.random.split(key, 7)
        bound = 1.0 / jnp.sqrt(fan_in)
        params.append(dict(
            w_mean=jax.random.uniform(k1, (fan_out, fan_in), jnp.float32, -bound, bound),
            w_std=jax.random.uniform(k2, (fan_out, fan_in), jnp.float32, -bound, bound),
            z_w=jax.random.normal(k3, (fan_out, fan_in), jnp.float32),
            b_mean=jax.random.uniform(k4, (1, fan_out), jnp.float32, -bound, bound),
            b_std=jax.random.uniform(k5, (1, fan_out), jnp.float32, -bound, bound),
            z_b=jax.random.normal(k6, (1, fan_out), jnp.float32),
        ))
    return params


def _reference_forward(x, params):
    """Pure-JAX reference mirroring the PyTorch forward."""
    n_linear = len(params)
    for j, p in enumerate(params):
        A = p["w_mean"] + _softplus(p["w_std"]) * p["z_w"]
        b = p["b_mean"] + _softplus(p["b_std"]) * p["z_b"]
        x = x @ A.T + b[0]
        if j < n_linear - 1:
            x = jnp.tanh(x)
    return x


if __name__ == "__main__":
    key = jax.random.PRNGKey(0)
    key, kx, kp = jax.random.split(key, 3)

    batch, in_features, hidden, out_features = 8, 16, 32, 4
    layer_dims = [(in_features, hidden), (hidden, hidden), (hidden, out_features)]

    x = jax.random.normal(kx, (batch, in_features), jnp.float32)
    params = init_bnn_params(kp, layer_dims)

    y = sequential_gaussian_bnn_forward(x, params)
    y = jax.block_until_ready(y)

    y_ref = _reference_forward(x, params)
    assert y.shape == (batch, out_features)
    assert jnp.allclose(y, y_ref, atol=1e-5, rtol=1e-5), "mismatch vs reference"

    # TODO(synk): log_prior/posterior_density, SSGE, functional_kl, gaussian_kl,
    # and GP-prior paths are training-time utilities, not the forward hot path;
    # not implemented as kernels. Only Linear/Tanh Sequential stacks supported.
    print("KERNEL_OK")
</pallas_src>

<mosaic_0001>
module attributes {stable_mosaic.version = 11 : i64} {
  func.func @_fused_bnn_kernel(%arg0: memref<8x128xf32, #tpu.memory_space<vmem>>, %arg1: memref<128x128xf32, #tpu.memory_space<vmem>>, %arg2: memref<128x128xf32, #tpu.memory_space<vmem>>, %arg3: memref<128x128xf32, #tpu.memory_space<vmem>>, %arg4: memref<1x128xf32, #tpu.memory_space<vmem>>, %arg5: memref<1x128xf32, #tpu.memory_space<vmem>>, %arg6: memref<1x128xf32, #tpu.memory_space<vmem>>, %arg7: memref<128x128xf32, #tpu.memory_space<vmem>>, %arg8: memref<128x128xf32, #tpu.memory_space<vmem>>, %arg9: memref<128x128xf32, #tpu.memory_space<vmem>>, %arg10: memref<1x128xf32, #tpu.memory_space<vmem>>, %arg11: memref<1x128xf32, #tpu.memory_space<vmem>>, %arg12: memref<1x128xf32, #tpu.memory_space<vmem>>, %arg13: memref<128x128xf32, #tpu.memory_space<vmem>>, %arg14: memref<128x128xf32, #tpu.memory_space<vmem>>, %arg15: memref<128x128xf32, #tpu.memory_space<vmem>>, %arg16: memref<1x128xf32, #tpu.memory_space<vmem>>, %arg17: memref<1x128xf32, #tpu.memory_space<vmem>>, %arg18: memref<1x128xf32, #tpu.memory_space<vmem>>, %arg19: memref<8x128xf32, #tpu.memory_space<vmem>>) attributes {dimension_semantics = [], scalar_prefetch = 0 : i64, scratch_operands = 0 : i64, tpu.core_type = #tpu.core_type<tc>} {
    %c0 = arith.constant 0 : index
    %c0_0 = arith.constant 0 : index
    %0 = vector.load %arg0[%c0, %c0_0] : memref<8x128xf32, #tpu.memory_space<vmem>>, vector<8x128xf32>
    %c0_1 = arith.constant 0 : index
    %c0_2 = arith.constant 0 : index
    %1 = vector.load %arg1[%c0_1, %c0_2] : memref<128x128xf32, #tpu.memory_space<vmem>>, vector<128x128xf32>
    %c0_3 = arith.constant 0 : index
    %c0_4 = arith.constant 0 : index
    %2 = vector.load %arg2[%c0_3, %c0_4] : memref<128x128xf32, #tpu.memory_space<vmem>>, vector<128x128xf32>
    %cst = arith.constant 0.000000e+00 : f32
    %3 = vector.broadcast %cst : f32 to vector<128x128xf32>
    %4 = arith.maximumf %2, %3 : vector<128x128xf32>
    %5 = math.absf %2 : vector<128x128xf32>
    %cst_5 = arith.constant 0.000000e+00 : f32
    %6 = vector.broadcast %cst_5 : f32 to vector<128x128xf32>
    %7 = arith.subf %6, %5 : vector<128x128xf32>
    %8 = math.exp %7 : vector<128x128xf32>
    %cst_6 = arith.constant 1.000000e+00 : f32
    %9 = vector.broadcast %cst_6 : f32 to vector<128x128xf32>
    %10 = arith.addf %9, %8 : vector<128x128xf32>
    %11 = math.log %10 : vector<128x128xf32>
    %12 = arith.addf %4, %11 : vector<128x128xf32>
    %c0_7 = arith.constant 0 : index
    %c0_8 = arith.constant 0 : index
    %13 = vector.load %arg3[%c0_7, %c0_8] : memref<128x128xf32, #tpu.memory_space<vmem>>, vector<128x128xf32>
    %14 = arith.mulf %12, %13 : vector<128x128xf32>
    %15 = arith.addf %1, %14 : vector<128x128xf32>
    %c0_9 = arith.constant 0 : index
    %c0_10 = arith.constant 0 : index
    %16 = vector.load %arg4[%c0_9, %c0_10] : memref<1x128xf32, #tpu.memory_space<vmem>>, vector<1x128xf32>
    %c0_11 = arith.constant 0 : index
    %c0_12 = arith.constant 0 : index
    %17 = vector.load %arg5[%c0_11, %c0_12] : memref<1x128xf32, #tpu.memory_space<vmem>>, vector<1x128xf32>
    %cst_13 = arith.constant 0.000000e+00 : f32
    %18 = vector.broadcast %cst_13 : f32 to vector<1x128xf32>
    %19 = arith.maximumf %17, %18 : vector<1x128xf32>
    %20 = math.absf %17 : vector<1x128xf32>
    %cst_14 = arith.constant 0.000000e+00 : f32
    %21 = vector.broadcast %cst_14 : f32 to vector<1x128xf32>
    %22 = arith.subf %21, %20 : vector<1x128xf32>
    %23 = math.exp %22 : vector<1x128xf32>
    %cst_15 = arith.constant 1.000000e+00 : f32
    %24 = vector.broadcast %cst_15 : f32 to vector<1x128xf32>
    %25 = arith.addf %24, %23 : vector<1x128xf32>
    %26 = math.log %25 : vector<1x128xf32>
    %27 = arith.addf %19, %26 : vector<1x128xf32>
    %c0_16 = arith.constant 0 : index
    %c0_17 = arith.constant 0 : index
    %28 = vector.load %arg6[%c0_16, %c0_17] : memref<1x128xf32, #tpu.memory_space<vmem>>, vector<1x128xf32>
    %29 = arith.mulf %27, %28 : vector<1x128xf32>
    %30 = arith.addf %16, %29 : vector<1x128xf32>
    %cst_18 = arith.constant dense<0.000000e+00> : vector<8x128xf32>
    %31 = tpu.matmul %0, %15, %cst_18 {dimension_numbers = #tpu.dot_dimension_numbers<[1], [1], [0], [0], [0, 0, 1, 0], [], []>} : vector<8x128xf32>, vector<128x128xf32>, vector<8x128xf32> -> vector<8x128xf32>
    %32 = vector.broadcast %30 : vector<1x128xf32> to vector<8x128xf32>
    %33 = arith.addf %31, %32 : vector<8x128xf32>
    %34 = math.tanh %33 : vector<8x128xf32>
    %c0_19 = arith.constant 0 : index
    %c0_20 = arith.constant 0 : index
    %35 = vector.load %arg7[%c0_19, %c0_20] : memref<128x128xf32, #tpu.memory_space<vmem>>, vector<128x128xf32>
    %c0_21 = arith.constant 0 : index
    %c0_22 = arith.constant 0 : index
    %36 = vector.load %arg8[%c0_21, %c0_22] : memref<128x128xf32, #tpu.memory_space<vmem>>, vector<128x128xf32>
    %cst_23 = arith.constant 0.000000e+00 : f32
    %37 = vector.broadcast %cst_23 : f32 to vector<128x128xf32>
    %38 = arith.maximumf %36, %37 : vector<128x128xf32>
    %39 = math.absf %36 : vector<128x128xf32>
    %cst_24 = arith.constant 0.000000e+00 : f32
    %40 = vector.broadcast %cst_24 : f32 to vector<128x128xf32>
    %41 = arith.subf %40, %39 : vector<128x128xf32>
    %42 = math.exp %41 : vector<128x128xf32>
    %cst_25 = arith.constant 1.000000e+00 : f32
    %43 = vector.broadcast %cst_25 : f32 to vector<128x128xf32>
    %44 = arith.addf %43, %42 : vector<128x128xf32>
    %45 = math.log %44 : vector<128x128xf32>
    %46 = arith.addf %38, %45 : vector<128x128xf32>
    %c0_26 = arith.constant 0 : index
    %c0_27 = arith.constant 0 : index
    %47 = vector.load %arg9[%c0_26, %c0_27] : memref<128x128xf32, #tpu.memory_space<vmem>>, vector<128x128xf32>
    %48 = arith.mulf %46, %47 : vector<128x128xf32>
    %49 = arith.addf %35, %48 : vector<128x128xf32>
    %c0_28 = arith.constant 0 : index
    %c0_29 = arith.constant 0 : index
    %50 = vector.load %arg10[%c0_28, %c0_29] : memref<1x128xf32, #tpu.memory_space<vmem>>, vector<1x128xf32>
    %c0_30 = arith.constant 0 : index
    %c0_31 = arith.constant 0 : index
    %51 = vector.load %arg11[%c0_30, %c0_31] : memref<1x128xf32, #tpu.memory_space<vmem>>, vector<1x128xf32>
    %cst_32 = arith.constant 0.000000e+00 : f32
    %52 = vector.broadcast %cst_32 : f32 to vector<1x128xf32>
    %53 = arith.maximumf %51, %52 : vector<1x128xf32>
    %54 = math.absf %51 : vector<1x128xf32>
    %cst_33 = arith.constant 0.000000e+00 : f32
    %55 = vector.broadcast %cst_33 : f32 to vector<1x128xf32>
    %56 = arith.subf %55, %54 : vector<1x128xf32>
    %57 = math.exp %56 : vector<1x128xf32>
    %cst_34 = arith.constant 1.000000e+00 : f32
    %58 = vector.broadcast %cst_34 : f32 to vector<1x128xf32>
    %59 = arith.addf %58, %57 : vector<1x128xf32>
    %60 = math.log %59 : vector<1x128xf32>
    %61 = arith.addf %53, %60 : vector<1x128xf32>
    %c0_35 = arith.constant 0 : index
    %c0_36 = arith.constant 0 : index
    %62 = vector.load %arg12[%c0_35, %c0_36] : memref<1x128xf32, #tpu.memory_space<vmem>>, vector<1x128xf32>
    %63 = arith.mulf %61, %62 : vector<1x128xf32>
    %64 = arith.addf %50, %63 : vector<1x128xf32>
    %cst_37 = arith.constant dense<0.000000e+00> : vector<8x128xf32>
    %65 = tpu.matmul %34, %49, %cst_37 {dimension_numbers = #tpu.dot_dimension_numbers<[1], [1], [0], [0], [0, 0, 1, 0], [], []>} : vector<8x128xf32>, vector<128x128xf32>, vector<8x128xf32> -> vector<8x128xf32>
    %66 = vector.broadcast %64 : vector<1x128xf32> to vector<8x128xf32>
    %67 = arith.addf %65, %66 : vector<8x128xf32>
    %68 = math.tanh %67 : vector<8x128xf32>
    %c0_38 = arith.constant 0 : index
    %c0_39 = arith.constant 0 : index
    %69 = vector.load %arg13[%c0_38, %c0_39] : memref<128x128xf32, #tpu.memory_space<vmem>>, vector<128x128xf32>
    %c0_40 = arith.constant 0 : index
    %c0_41 = arith.constant 0 : index
    %70 = vector.load %arg14[%c0_40, %c0_41] : memref<128x128xf32, #tpu.memory_space<vmem>>, vector<128x128xf32>
    %cst_42 = arith.constant 0.000000e+00 : f32
    %71 = vector.broadcast %cst_42 : f32 to vector<128x128xf32>
    %72 = arith.maximumf %70, %71 : vector<128x128xf32>
    %73 = math.absf %70 : vector<128x128xf32>
    %cst_43 = arith.constant 0.000000e+00 : f32
    %74 = vector.broadcast %cst_43 : f32 to vector<128x128xf32>
    %75 = arith.subf %74, %73 : vector<128x128xf32>
    %76 = math.exp %75 : vector<128x128xf32>
    %cst_44 = arith.constant 1.000000e+00 : f32
    %77 = vector.broadcast %cst_44 : f32 to vector<128x128xf32>
    %78 = arith.addf %77, %76 : vector<128x128xf32>
    %79 = math.log %78 : vector<128x128xf32>
    %80 = arith.addf %72, %79 : vector<128x128xf32>
    %c0_45 = arith.constant 0 : index
    %c0_46 = arith.constant 0 : index
    %81 = vector.load %arg15[%c0_45, %c0_46] : memref<128x128xf32, #tpu.memory_space<vmem>>, vector<128x128xf32>
    %82 = arith.mulf %80, %81 : vector<128x128xf32>
    %83 = arith.addf %69, %82 : vector<128x128xf32>
    %c0_47 = arith.constant 0 : index
    %c0_48 = arith.constant 0 : index
    %84 = vector.load %arg16[%c0_47, %c0_48] : memref<1x128xf32, #tpu.memory_space<vmem>>, vector<1x128xf32>
    %c0_49 = arith.constant 0 : index
    %c0_50 = arith.constant 0 : index
    %85 = vector.load %arg17[%c0_49, %c0_50] : memref<1x128xf32, #tpu.memory_space<vmem>>, vector<1x128xf32>
    %cst_51 = arith.constant 0.000000e+00 : f32
    %86 = vector.broadcast %cst_51 : f32 to vector<1x128xf32>
    %87 = arith.maximumf %85, %86 : vector<1x128xf32>
    %88 = math.absf %85 : vector<1x128xf32>
    %cst_52 = arith.constant 0.000000e+00 : f32
    %89 = vector.broadcast %cst_52 : f32 to vector<1x128xf32>
    %90 = arith.subf %89, %88 : vector<1x128xf32>
    %91 = math.exp %90 : vector<1x128xf32>
    %cst_53 = arith.constant 1.000000e+00 : f32
    %92 = vector.broadcast %cst_53 : f32 to vector<1x128xf32>
    %93 = arith.addf %92, %91 : vector<1x128xf32>
    %94 = math.log %93 : vector<1x128xf32>
    %95 = arith.addf %87, %94 : vector<1x128xf32>
    %c0_54 = arith.constant 0 : index
    %c0_55 = arith.constant 0 : index
    %96 = vector.load %arg18[%c0_54, %c0_55] : memref<1x128xf32, #tpu.memory_space<vmem>>, vector<1x128xf32>
    %97 = arith.mulf %95, %96 : vector<1x128xf32>
    %98 = arith.addf %84, %97 : vector<1x128xf32>
    %cst_56 = arith.constant dense<0.000000e+00> : vector<8x128xf32>
    %99 = tpu.matmul %68, %83, %cst_56 {dimension_numbers = #tpu.dot_dimension_numbers<[1], [1], [0], [0], [0, 0, 1, 0], [], []>} : vector<8x128xf32>, vector<128x128xf32>, vector<8x128xf32> -> vector<8x128xf32>
    %100 = vector.broadcast %98 : vector<1x128xf32> to vector<8x128xf32>
    %101 = arith.addf %99, %100 : vector<8x128xf32>
    %c0_57 = arith.constant 0 : index
    %c0_58 = arith.constant 0 : index
    %102 = vector.load %arg19[%c0_57, %c0_58] : memref<8x128xf32, #tpu.memory_space<vmem>>, vector<8x128xf32>
    tpu.vector_store %arg19[%c0_57, %c0_58], %101 {strides = array<i32>} : memref<8x128xf32, #tpu.memory_space<vmem>>, vector<8x128xf32>,
    return
  }
}

</mosaic_0001>

<llo_original>
// kernel: tpu_custom_call.1
$region0: #{tpu_custom_call.1}
  #allocation0 [shape = 'u32[]', space=smem, size = 0x4, offset = 0x4, fixed_abs, tag = 'smem constant byte address 0x4 - core index']
  #allocation1 [shape = 'u32[72,128]{1,0:T(1,128)}', space=vmem, size = 0x9000, scoped, tag = 'internal scratch']
  %s0 = inlined_call_operand.hbm [shape: f32[8,128], index: 0, kind: input, shape index: {}]
  %s1 = inlined_call_operand.hbm [shape: f32[128,128], index: 1, kind: input, shape index: {}]
  %s2 = inlined_call_operand.hbm [shape: f32[128,128], index: 2, kind: input, shape index: {}]
  %s3 = inlined_call_operand.hbm [shape: f32[128,128], index: 3, kind: input, shape index: {}]
  %s4 = inlined_call_operand.vmem [shape: f32[1,128], index: 4, kind: input, shape index: {}]
  %s5 = inlined_call_operand.vmem [shape: f32[1,128], index: 5, kind: input, shape index: {}]
  %s6 = inlined_call_operand.vmem [shape: f32[1,128], index: 6, kind: input, shape index: {}]
  %s7 = inlined_call_operand.hbm [shape: f32[128,128], index: 7, kind: input, shape index: {}]
  %s8 = inlined_call_operand.hbm [shape: f32[128,128], index: 8, kind: input, shape index: {}]
  %s9 = inlined_call_operand.hbm [shape: f32[128,128], index: 9, kind: input, shape index: {}]
  %s10 = inlined_call_operand.vmem [shape: f32[1,128], index: 10, kind: input, shape index: {}]
  %s11 = inlined_call_operand.vmem [shape: f32[1,128], index: 11, kind: input, shape index: {}]
  %s12 = inlined_call_operand.vmem [shape: f32[1,128], index: 12, kind: input, shape index: {}]
  %s13 = inlined_call_operand.hbm [shape: f32[128,128], index: 13, kind: input, shape index: {}]
  %s14 = inlined_call_operand.hbm [shape: f32[128,128], index: 14, kind: input, shape index: {}]
  %s15 = inlined_call_operand.hbm [shape: f32[128,128], index: 15, kind: input, shape index: {}]
  %s16 = inlined_call_operand.vmem [shape: f32[1,128], index: 16, kind: input, shape index: {}]
  %s17 = inlined_call_operand.vmem [shape: f32[1,128], index: 17, kind: input, shape index: {}]
  %s18 = inlined_call_operand.vmem [shape: f32[1,128], index: 18, kind: input, shape index: {}]
  %s19 = inlined_call_operand.hbm [shape: f32[8,128], index: 19, kind: output, shape index: {}]
  %s20 = sld [smem:[#allocation0]]
  $region126: #{tpu_custom_call.1} parent=0
    _
  %s22 = ssub.s32 1, %s20
  %s23 = scalar_select 0, %s22, %s20
  $region1: #{tpu_custom_call.1} parent=0
    #allocation2 [shape = 'u8[4096]{0}', space=vmem, size = 0x1000, scoped, tag = 'input window, operand 0, single buffered']
    #allocation3 [shape = 's32[1]{0}', space=sflag, size = 0x4, scoped, tag = 'scoped memory for tpu_custom_call.1']
    #allocation4 [shape = 's32[1]{0}', space=sflag, size = 0x4, scoped, tag = 'scoped memory for tpu_custom_call.1']
    #allocation5 [shape = 'u8[65536]{0}', space=vmem, size = 0x10000, scoped, tag = 'input window, operand 1, single buffered']
    #allocation6 [shape = 's32[1]{0}', space=sflag, size = 0x4, scoped, tag = 'scoped memory for tpu_custom_call.1']
    #allocation7 [shape = 'u8[65536]{0}', space=vmem, size = 0x10000, scoped, tag = 'input window, operand 2, single buffered']
    #allocation8 [shape = 'u8[65536]{0}', space=vmem, size = 0x10000, scoped, tag = 'input window, operand 3, single buffered']
    #allocation9 [shape = 's32[1]{0}', space=sflag, size = 0x4, scoped, tag = 'scoped memory for tpu_custom_call.1']
    #allocation10 [shape = 'u8[65536]{0}', space=vmem, size = 0x10000, scoped, tag = 'input window, operand 7, single buffered']
    #allocation11 [shape = 'u8[65536]{0}', space=vmem, size = 0x10000, scoped, tag = 'input window, operand 8, single buffered']
    #allocation12 [shape = 's32[1]{0}', space=sflag, size = 0x4, scoped, tag = 'scoped memory for tpu_custom_call.1']
    #allocation13 [shape = 'u8[65536]{0}', space=vmem, size = 0x10000, scoped, tag = 'input window, operand 9, single buffered']
    #allocation14 [shape = 'u8[65536]{0}', space=vmem, size = 0x10000, scoped, tag = 'input window, operand 13, single buffered']
    #allocation15 [shape = 's32[1]{0}', space=sflag, size = 0x4, scoped, tag = 'scoped memory for tpu_custom_call.1']
    #allocation16 [shape = 'u8[65536]{0}', space=vmem, size = 0x10000, scoped, tag = 'input window, operand 14, single buffered']
    #allocation17 [shape = 'u8[65536]{0}', space=vmem, size = 0x10000, scoped, tag = 'input window, operand 15, single buffered']
    #allocation18 [shape = 's32[1]{0}', space=sflag, size = 0x4, scoped, tag = 'scoped memory for tpu_custom_call.1']
    #allocation19 [shape = 'u8[4096]{0}', space=vmem, size = 0x1000, scoped, tag = 'output window, operand 0, single buffered']
    %24 = vsyncpa [#allocation3], 0
    %25 = vsyncpa [#allocation6], 0
    %26 = vsyncpa [#allocation9], 0
    %27 = vsyncpa [#allocation12], 0
    %28 = vsyncpa [#allocation15], 0
    %29 = vsyncpa [#allocation18], 0
    %30 = vsyncpa [#allocation4], 0
    // Predicated region
    $region2: #{tpu_custom_call.1} parent=1 // pred_check
      _
    $region3: #{tpu_custom_call.1} parent=1 // pred_check_branch
      %32 = sbr.rel (0) target = $region5
    $region4: #{tpu_custom_call.1} parent=1 // pred_region
      %34 = vsyncadd [#allocation3], 0
      %s36 = sshll.u32 %s0, 4
      %s37 = int_to_ptr.hbm [resolvable:$true] %s36
      %s38 = sshll.u32 [#allocation2], 4
      %s39 = int_to_ptr.vmem [resolvable:$true] %s38
      %41 = dma.hbm_to_vmem [thread:$0]  %s37, 128, %s39, [#allocation3]
    $region5: #{tpu_custom_call.1} parent=1 // pred_fallthru
      _
    // Predicated region
    $region6: #{tpu_custom_call.1} parent=1 // pred_check
      _
    $region7: #{tpu_custom_call.1} parent=1 // pred_check_branch
      %43 = sbr.rel (0) target = $region9
    $region8: #{tpu_custom_call.1} parent=1 // pred_region
      %45 = vsyncadd [#allocation6], 0
      %s46 = sshll.u32 %s1, 4
      %s47 = int_to_ptr.hbm [resolvable:$true] %s46
      %s48 = sshll.u32 [#allocation5], 4
      %s49 = int_to_ptr.vmem [resolvable:$true] %s48
      %54 = dma.hbm_to_vmem [thread:$0]  %s47, 2048, %s49, [#allocation6], 128, 128, 8
    $region9: #{tpu_custom_call.1} parent=1 // pred_fallthru
      _
    // Predicated region
    $region10: #{tpu_custom_call.1} parent=1 // pred_check
      _
    $region11: #{tpu_custom_call.1} parent=1 // pred_check_branch
      %56 = sbr.rel (0) target = $region13
    $region12: #{tpu_custom_call.1} parent=1 // pred_region
      %58 = vsyncadd [#allocation6], 0
      %s59 = sshll.u32 %s2, 4
      %s60 = int_to_ptr.hbm [resolvable:$true] %s59
      %s61 = sshll.u32 [#allocation7], 4
      %s62 = int_to_ptr.vmem [resolvable:$true] %s61
      %67 = dma.hbm_to_vmem [thread:$0]  %s60, 2048, %s62, [#allocation6], 128, 128, 8
    $region13: #{tpu_custom_call.1} parent=1 // pred_fallthru
      _
    // Predicated region
    $region14: #{tpu_custom_call.1} parent=1 // pred_check
      _
    $region15: #{tpu_custom_call.1} parent=1 // pred_check_branch
      %69 = sbr.rel (0) target = $region17
    $region16: #{tpu_custom_call.1} parent=1 // pred_region
      %71 = vsyncadd [#allocation9], 0
      %s72 = sshll.u32 %s3, 4
      %s73 = int_to_ptr.hbm [resolvable:$true] %s72
      %s74 = sshll.u32 [#allocation8], 4
      %s75 = int_to_ptr.vmem [resolvable:$true] %s74
      %80 = dma.hbm_to_vmem [thread:$0]  %s73, 2048, %s75, [#allocation9], 128, 128, 8
    $region17: #{tpu_custom_call.1} parent=1 // pred_fallthru
      _
    // Predicated region
    $region18: #{tpu_custom_call.1} parent=1 // pred_check
      _
    $region19: #{tpu_custom_call.1} parent=1 // pred_check_branch
      %82 = sbr.rel (0) target = $region21
    $region20: #{tpu_custom_call.1} parent=1 // pred_region
      _
    $region21: #{tpu_custom_call.1} parent=1 // pred_fallthru
      _
    // Predicated region
    $region22: #{tpu_custom_call.1} parent=1 // pred_check
      _
    $region23: #{tpu_custom_call.1} parent=1 // pred_check_branch
      %84 = sbr.rel (0) target = $region25
    $region24: #{tpu_custom_call.1} parent=1 // pred_region
      _
    $region25: #{tpu_custom_call.1} parent=1 // pred_fallthru
      _
    // Predicated region
    $region26: #{tpu_custom_call.1} parent=1 // pred_check
      _
    $region27: #{tpu_custom_call.1} parent=1 // pred_check_branch
      %86 = sbr.rel (0) target = $region29
    $region28: #{tpu_custom_call.1} parent=1 // pred_region
      _
    $region29: #{tpu_custom_call.1} parent=1 // pred_fallthru
      _
    // Predicated region
    $region30: #{tpu_custom_call.1} parent=1 // pred_check
      _
    $region31: #{tpu_custom_call.1} parent=1 // pred_check_branch
      %88 = sbr.rel (0) target = $region33
    $region32: #{tpu_custom_call.1} parent=1 // pred_region
      %90 = vsyncadd [#allocation9], 0
      %s91 = sshll.u32 %s7, 4
      %s92 = int_to_ptr.hbm [resolvable:$true] %s91
      %s93 = sshll.u32 [#allocation10], 4
      %s94 = int_to_ptr.vmem [resolvable:$true] %s93
      %99 = dma.hbm_to_vmem [thread:$0]  %s92, 2048, %s94, [#allocation9], 128, 128, 8
    $region33: #{tpu_custom_call.1} parent=1 // pred_fallthru
      _
    // Predicated region
    $region34: #{tpu_custom_call.1} parent=1 // pred_check
      _
    $region35: #{tpu_custom_call.1} parent=1 // pred_check_branch
      %101 = sbr.rel (0) target = $region37
    $region36: #{tpu_custom_call.1} parent=1 // pred_region
      %103 = vsyncadd [#allocation12], 0
      %s104 = sshll.u32 %s8, 4
      %s105 = int_to_ptr.hbm [resolvable:$true] %s104
      %s106 = sshll.u32 [#allocation11], 4
      %s107 = int_to_ptr.vmem [resolvable:$true] %s106
      %112 = dma.hbm_to_vmem [thread:$0]  %s105, 2048, %s107, [#allocation12], 128, 128, 8
    $region37: #{tpu_custom_call.1} parent=1 // pred_fallthru
      _
    // Predicated region
    $region38: #{tpu_custom_call.1} parent=1 // pred_check
      _
    $region39: #{tpu_custom_call.1} parent=1 // pred_check_branch
      %114 = sbr.rel (0) target = $region41
    $region40: #{tpu_custom_call.1} parent=1 // pred_region
      %116 = vsyncadd [#allocation12], 0
      %s117 = sshll.u32 %s9, 4
      %s118 = int_to_ptr.hbm [resolvable:$true] %s117
      %s119 = sshll.u32 [#allocation13], 4
      %s120 = int_to_ptr.vmem [resolvable:$true] %s119
      %125 = dma.hbm_to_vmem [thread:$0]  %s118, 2048, %s120, [#allocation12], 128, 128, 8
    $region41: #{tpu_custom_call.1} parent=1 // pred_fallthru
      _
    // Predicated region
    $region42: #{tpu_custom_call.1} parent=1 // pred_check
      _
    $region43: #{tpu_custom_call.1} parent=1 // pred_check_branch
      %127 = sbr.rel (0) target = $region45
    $region44: #{tpu_custom_call.1} parent=1 // pred_region
      _
    $region45: #{tpu_custom_call.1} parent=1 // pred_fallthru
      _
    // Predicated region
    $region46: #{tpu_custom_call.1} parent=1 // pred_check
      _
    $region47: #{tpu_custom_call.1} parent=1 // pred_check_branch
      %129 = sbr.rel (0) target = $region49
    $region48: #{tpu_custom_call.1} parent=1 // pred_region
      _
    $region49: #{tpu_custom_call.1} parent=1 // pred_fallthru
      _
    // Predicated region
    $region50: #{tpu_custom_call.1} parent=1 // pred_check
      _
    $region51: #{tpu_custom_call.1} parent=1 // pred_check_branch
      %131 = sbr.rel (0) target = $region53
    $region52: #{tpu_custom_call.1} parent=1 // pred_region
      _
    $region53: #{tpu_custom_call.1} parent=1 // pred_fallthru
      _
    // Predicated region
    $region54: #{tpu_custom_call.1} parent=1 // pred_check
      _
    $region55: #{tpu_custom_call.1} parent=1 // pred_check_branch
      %133 = sbr.rel (0) target = $region57
    $region56: #{tpu_custom_call.1} parent=1 // pred_region
      %135 = vsyncadd [#allocation15], 0
      %s136 = sshll.u32 %s13, 4
      %s137 = int_to_ptr.hbm [resolvable:$true] %s136
      %s138 = sshll.u32 [#allocation14], 4
      %s139 = int_to_ptr.vmem [resolvable:$true] %s138
      %144 = dma.hbm_to_vmem [thread:$0]  %s137, 2048, %s139, [#allocation15], 128, 128, 8
    $region57: #{tpu_custom_call.1} parent=1 // pred_fallthru
      _
    // Predicated region
    $region58: #{tpu_custom_call.1} parent=1 // pred_check
      _
    $region59: #{tpu_custom_call.1} parent=1 // pred_check_branch
      %146 = sbr.rel (0) target = $region61
    $region60: #{tpu_custom_call.1} parent=1 // pred_region
      %148 = vsyncadd [#allocation15], 0
      %s149 = sshll.u32 %s14, 4
      %s150 = int_to_ptr.hbm [resolvable:$true] %s149
      %s151 = sshll.u32 [#allocation16], 4
      %s152 = int_to_ptr.vmem [resolvable:$true] %s151
      %157 = dma.hbm_to_vmem [thread:$0]  %s150, 2048, %s152, [#allocation15], 128, 128, 8
    $region61: #{tpu_custom_call.1} parent=1 // pred_fallthru
      _
    // Predicated region
    $region62: #{tpu_custom_call.1} parent=1 // pred_check
      _
    $region63: #{tpu_custom_call.1} parent=1 // pred_check_branch
      %159 = sbr.rel (0) target = $region65
    $region64: #{tpu_custom_call.1} parent=1 // pred_region
      %161 = vsyncadd [#allocation18], 0
      %s162 = sshll.u32 %s15, 4
      %s163 = int_to_ptr.hbm [resolvable:$true] %s162
      %s164 = sshll.u32 [#allocation17], 4
      %s165 = int_to_ptr.vmem [resolvable:$true] %s164
      %170 = dma.hbm_to_vmem [thread:$0]  %s163, 2048, %s165, [#allocation18], 128, 128, 8
    $region65: #{tpu_custom_call.1} parent=1 // pred_fallthru
      _
    // Predicated region
    $region66: #{tpu_custom_call.1} parent=1 // pred_check
      _
    $region67: #{tpu_custom_call.1} parent=1 // pred_check_branch
      %172 = sbr.rel (0) target = $region69
    $region68: #{tpu_custom_call.1} parent=1 // pred_region
      _
    $region69: #{tpu_custom_call.1} parent=1 // pred_fallthru
      _
    // Predicated region
    $region70: #{tpu_custom_call.1} parent=1 // pred_check
      _
    $region71: #{tpu_custom_call.1} parent=1 // pred_check_branch
      %174 = sbr.rel (0) target = $region73
    $region72: #{tpu_custom_call.1} parent=1 // pred_region
      _
    $region73: #{tpu_custom_call.1} parent=1 // pred_fallthru
      _
    // Predicated region
    $region74: #{tpu_custom_call.1} parent=1 // pred_check
      _
    $region75: #{tpu_custom_call.1} parent=1 // pred_check_branch
      %176 = sbr.rel (0) target = $region77
    $region76: #{tpu_custom_call.1} parent=1 // pred_region
      _
    $region77: #{tpu_custom_call.1} parent=1 // pred_fallthru
      _
    // Predicated region
    $region78: #{tpu_custom_call.1} parent=1 // pred_check
      _
    $region79: #{tpu_custom_call.1} parent=1 // pred_check_branch
      %178 = sbr.rel (0) target = $region81
    $region80: #{tpu_custom_call.1} parent=1 // pred_region
      %180 = dma.done [#allocation3], 128
    $region81: #{tpu_custom_call.1} parent=1 // pred_fallthru
      _
    // Predicated region
    $region82: #{tpu_custom_call.1} parent=1 // pred_check
      _
    $region83: #{tpu_custom_call.1} parent=1 // pred_check_branch
      %182 = sbr.rel (0) target = $region85
    $region84: #{tpu_custom_call.1} parent=1 // pred_region
      %184 = dma.done [#allocation6], 2048
    $region85: #{tpu_custom_call.1} parent=1 // pred_fallthru
      _
    // Predicated region
    $region86: #{tpu_custom_call.1} parent=1 // pred_check
      _
    $region87: #{tpu_custom_call.1} parent=1 // pred_check_branch
      %186 = sbr.rel (0) target = $region89
    $region88: #{tpu_custom_call.1} parent=1 // pred_region
      %188 = dma.done [#allocation6], 2048
    $region89: #{tpu_custom_call.1} parent=1 // pred_fallthru
      _
    // Predicated region
    $region90: #{tpu_custom_call.1} parent=1 // pred_check
      _
    $region91: #{tpu_custom_call.1} parent=1 // pred_check_branch
      %190 = sbr.rel (0) target = $region93
    $region92: #{tpu_custom_call.1} parent=1 // pred_region
      %192 = dma.done [#allocation9], 2048
    $region93: #{tpu_custom_call.1} parent=1 // pred_fallthru
      _
    // Predicated region
    $region94: #{tpu_custom_call.1} parent=1 // pred_check
      _
    $region95: #{tpu_custom_call.1} parent=1 // pred_check_branch
      %194 = sbr.rel (0) target = $region97
    $region96: #{tpu_custom_call.1} parent=1 // pred_region
      %196 = dma.done [#allocation9], 2048
    $region97: #{tpu_custom_call.1} parent=1 // pred_fallthru
      _
    // Predicated region
    $region98: #{tpu_custom_call.1} parent=1 // pred_check
      _
    $region99: #{tpu_custom_call.1} parent=1 // pred_check_branch
      %198 = sbr.rel (0) target = $region101
    $region100: #{tpu_custom_call.1} parent=1 // pred_region
      %200 = dma.done [#allocation12], 2048
    $region101: #{tpu_custom_call.1} parent=1 // pred_fallthru
      _
    // Predicated region
    $region102: #{tpu_custom_call.1} parent=1 // pred_check
      _
    $region103: #{tpu_custom_call.1} parent=1 // pred_check_branch
      %202 = sbr.rel (0) target = $region105
    $region104: #{tpu_custom_call.1} parent=1 // pred_region
      %204 = dma.done [#allocation12], 2048
    $region105: #{tpu_custom_call.1} parent=1 // pred_fallthru
      _
    // Predicated region
    $region106: #{tpu_custom_call.1} parent=1 // pred_check
      _
    $region107: #{tpu_custom_call.1} parent=1 // pred_check_branch
      %206 = sbr.rel (0) target = $region109
    $region108: #{tpu_custom_call.1} parent=1 // pred_region
      %208 = dma.done [#allocation15], 2048
    $region109: #{tpu_custom_call.1} parent=1 // pred_fallthru
      _
    // Predicated region
    $region110: #{tpu_custom_call.1} parent=1 // pred_check
      _
    $region111: #{tpu_custom_call.1} parent=1 // pred_check_branch
      %210 = sbr.rel (0) target = $region113
    $region112: #{tpu_custom_call.1} parent=1 // pred_region
      %212 = dma.done [#allocation15], 2048
    $region113: #{tpu_custom_call.1} parent=1 // pred_fallthru
      _
    // Predicated region
    $region114: #{tpu_custom_call.1} parent=1 // pred_check
      _
    $region115: #{tpu_custom_call.1} parent=1 // pred_check_branch
      %214 = sbr.rel (0) target = $region117
    $region116: #{tpu_custom_call.1} parent=1 // pred_region
      %216 = dma.done [#allocation18], 2048
    $region117: #{tpu_custom_call.1} parent=1 // pred_fallthru
      _
    %v217 = vld [vmem:[#allocation2] sm:$0xff]
    %v218 = vld [vmem:[#allocation5] sm:$0xff]
    %v219 = vld [vmem:[#allocation5 + $0x8] sm:$0xff]
    %v220 = vld [vmem:[#allocation5 + $0x10] sm:$0xff]
    %v221 = vld [vmem:[#allocation5 + $0x18] sm:$0xff]
    %v222 = vld [vmem:[#allocation5 + $0x20] sm:$0xff]
    %v223 = vld [vmem:[#allocation5 + $0x28] sm:$0xff]
    %v224 = vld [vmem:[#allocation5 + $0x30] sm:$0xff]
    %v225 = vld [vmem:[#allocation5 + $0x38] sm:$0xff]
    %v226 = vld [vmem:[#allocation5 + $0x40] sm:$0xff]
    %v227 = vld [vmem:[#allocation5 + $0x48] sm:$0xff]
    %v228 = vld [vmem:[#allocation5 + $0x50] sm:$0xff]
    %v229 = vld [vmem:[#allocation5 + $0x58] sm:$0xff]
    %v230 = vld [vmem:[#allocation5 + $0x60] sm:$0xff]
    %v231 = vld [vmem:[#allocation5 + $0x68] sm:$0xff]
    %v232 = vld [vmem:[#allocation5 + $0x70] sm:$0xff]
    %v233 = vld [vmem:[#allocation5 + $0x78] sm:$0xff]
    %v234 = vld [vmem:[#allocation7] sm:$0xff]
    %v235 = vld [vmem:[#allocation7 + $0x8] sm:$0xff]
    %v236 = vld [vmem:[#allocation7 + $0x10] sm:$0xff]
    %v237 = vld [vmem:[#allocation7 + $0x18] sm:$0xff]
    %v238 = vld [vmem:[#allocation7 + $0x20] sm:$0xff]
    %v239 = vld [vmem:[#allocation7 + $0x28] sm:$0xff]
    %v240 = vld [vmem:[#allocation7 + $0x30] sm:$0xff]
    %v241 = vld [vmem:[#allocation7 + $0x38] sm:$0xff]
    %v242 = vld [vmem:[#allocation7 + $0x40] sm:$0xff]
    %v243 = vld [vmem:[#allocation7 + $0x48] sm:$0xff]
    %v244 = vld [vmem:[#allocation7 + $0x50] sm:$0xff]
    %v245 = vld [vmem:[#allocation7 + $0x58] sm:$0xff]
    %v246 = vld [vmem:[#allocation7 + $0x60] sm:$0xff]
    %v247 = vld [vmem:[#allocation7 + $0x68] sm:$0xff]
    %v248 = vld [vmem:[#allocation7 + $0x70] sm:$0xff]
    %v249 = vld [vmem:[#allocation7 + $0x78] sm:$0xff]
    %v250 = vmax.f32 %v234, 0.0
    %v251 = vmax.f32 %v235, 0.0
    %v252 = vmax.f32 %v236, 0.0
    %v253 = vmax.f32 %v237, 0.0
    %v254 = vmax.f32 %v238, 0.0
    %v255 = vmax.f32 %v239, 0.0
    %v256 = vmax.f32 %v240, 0.0
    %v257 = vmax.f32 %v241, 0.0
    %v258 = vmax.f32 %v242, 0.0
    %v259 = vmax.f32 %v243, 0.0
    %v260 = vmax.f32 %v244, 0.0
    %v261 = vmax.f32 %v245, 0.0
    %v262 = vmax.f32 %v246, 0.0
    %v263 = vmax.f32 %v247, 0.0
    %v264 = vmax.f32 %v248, 0.0
    %v265 = vmax.f32 %v249, 0.0
    %v266 = vand.u32 2147483647, %v234
    %v267 = vand.u32 2147483647, %v235
    %v268 = vand.u32 2147483647, %v236
    %v269 = vand.u32 2147483647, %v237
    %v270 = vand.u32 2147483647, %v238
    %v271 = vand.u32 2147483647, %v239
    %v272 = vand.u32 2147483647, %v240
    %v273 = vand.u32 2147483647, %v241
    %v274 = vand.u32 2147483647, %v242
    %v275 = vand.u32 2147483647, %v243
    %v276 = vand.u32 2147483647, %v244
    %v277 = vand.u32 2147483647, %v245
    %v278 = vand.u32 2147483647, %v246
    %v279 = vand.u32 2147483647, %v247
    %v280 = vand.u32 2147483647, %v248
    %v281 = vand.u32 2147483647, %v249
    %v282 = vsub.f32 0.0, %v266
    %v283 = vsub.f32 0.0, %v267
    %v284 = vsub.f32 0.0, %v268
    %v285 = vsub.f32 0.0, %v269
    %v286 = vsub.f32 0.0, %v270
    %v287 = vsub.f32 0.0, %v271
    %v288 = vsub.f32 0.0, %v272
    %v289 = vsub.f32 0.0, %v273
    %v290 = vsub.f32 0.0, %v274
    %v291 = vsub.f32 0.0, %v275
    %v292 = vsub.f32 0.0, %v276
    %v293 = vsub.f32 0.0, %v277
    %v294 = vsub.f32 0.0, %v278
    %v295 = vsub.f32 0.0, %v279
    %v296 = vsub.f32 0.0, %v280
    %v297 = vsub.f32 0.0, %v281
    %v298 = vmul.f32 %v282, 1.442695
    %v299 = vpow.pop %v298
    %v300 = vmul.f32 %v283, 1.442695
    %v301 = vpow.pop %v300
    %v302 = vmul.f32 %v284, 1.442695
    %v303 = vpow.pop %v302
    %v304 = vmul.f32 %v285, 1.442695
    %v305 = vpow.pop %v304
    %v306 = vmul.f32 %v286, 1.442695
    %v307 = vpow.pop %v306
    %v308 = vmul.f32 %v287, 1.442695
    %v309 = vpow.pop %v308
    %v310 = vmul.f32 %v288, 1.442695
    %v311 = vpow.pop %v310
    %v312 = vmul.f32 %v289, 1.442695
    %v313 = vpow.pop %v312
    %v314 = vmul.f32 %v290, 1.442695
    %v315 = vpow.pop %v314
    %v316 = vmul.f32 %v291, 1.442695
    %v317 = vpow.pop %v316
    %v318 = vmul.f32 %v292, 1.442695
    %v319 = vpow.pop %v318
    %v320 = vmul.f32 %v293, 1.442695
    %v321 = vpow.pop %v320
    %v322 = vmul.f32 %v294, 1.442695
    %v323 = vpow.pop %v322
    %v324 = vmul.f32 %v295, 1.442695
    %v325 = vpow.pop %v324
    %v326 = vmul.f32 %v296, 1.442695
    %v327 = vpow.pop %v326
    %v328 = vmul.f32 %v297, 1.442695
    %v329 = vpow.pop %v328
    %v330 = vadd.f32 %v299, 1.0
    %v331 = vadd.f32 %v301, 1.0
    %v332 = vadd.f32 %v303, 1.0
    %v333 = vadd.f32 %v305, 1.0
    %v334 = vadd.f32 %v307, 1.0
    %v335 = vadd.f32 %v309, 1.0
    %v336 = vadd.f32 %v311, 1.0
    %v337 = vadd.f32 %v313, 1.0
    %v338 = vadd.f32 %v315, 1.0
    %v339 = vadd.f32 %v317, 1.0
    %v340 = vadd.f32 %v319, 1.0
    %v341 = vadd.f32 %v321, 1.0
    %v342 = vadd.f32 %v323, 1.0
    %v343 = vadd.f32 %v325, 1.0
    %v344 = vadd.f32 %v327, 1.0
    %v345 = vadd.f32 %v329, 1.0
    %v346 = vlog2.pop %v330
    %v347 = vmul.f32 %v346, 0.6931472
    %v348 = vlog2.pop %v331
    %v349 = vmul.f32 %v348, 0.6931472
    %v350 = vlog2.pop %v332
    %v351 = vmul.f32 %v350, 0.6931472
    %v352 = vlog2.pop %v333
    %v353 = vmul.f32 %v352, 0.6931472
    %v354 = vlog2.pop %v334
    %v355 = vmul.f32 %v354, 0.6931472
    %v356 = vlog2.pop %v335
    %v357 = vmul.f32 %v356, 0.6931472
    %v358 = vlog2.pop %v336
    %v359 = vmul.f32 %v358, 0.6931472
    %v360 = vlog2.pop %v337
    %v361 = vmul.f32 %v360, 0.6931472
    %v362 = vlog2.pop %v338
    %v363 = vmul.f32 %v362, 0.6931472
    %v364 = vlog2.pop %v339
    %v365 = vmul.f32 %v364, 0.6931472
    %v366 = vlog2.pop %v340
    %v367 = vmul.f32 %v366, 0.6931472
    %v368 = vlog2.pop %v341
    %v369 = vmul.f32 %v368, 0.6931472
    %v370 = vlog2.pop %v342
    %v371 = vmul.f32 %v370, 0.6931472
    %v372 = vlog2.pop %v343
    %v373 = vmul.f32 %v372, 0.6931472
    %v374 = vlog2.pop %v344
    %v375 = vmul.f32 %v374, 0.6931472
    %v376 = vlog2.pop %v345
    %v377 = vmul.f32 %v376, 0.6931472
    %v378 = vadd.f32 %v250, %v347
    %v379 = vadd.f32 %v251, %v349
    %v380 = vadd.f32 %v252, %v351
    %v381 = vadd.f32 %v253, %v353
    %v382 = vadd.f32 %v254, %v355
    %v383 = vadd.f32 %v255, %v357
    %v384 = vadd.f32 %v256, %v359
    %v385 = vadd.f32 %v257, %v361
    %v386 = vadd.f32 %v258, %v363
    %v387 = vadd.f32 %v259, %v365
    %v388 = vadd.f32 %v260, %v367
    %v389 = vadd.f32 %v261, %v369
    %v390 = vadd.f32 %v262, %v371
    %v391 = vadd.f32 %v263, %v373
    %v392 = vadd.f32 %v264, %v375
    %v393 = vadd.f32 %v265, %v377
    %v394 = vld [vmem:[#allocation8] sm:$0xff]
    %v395 = vld [vmem:[#allocation8 + $0x8] sm:$0xff]
    %v396 = vld [vmem:[#allocation8 + $0x10] sm:$0xff]
    %v397 = vld [vmem:[#allocation8 + $0x18] sm:$0xff]
    %v398 = vld [vmem:[#allocation8 + $0x20] sm:$0xff]
    %v399 = vld [vmem:[#allocation8 + $0x28] sm:$0xff]
    %v400 = vld [vmem:[#allocation8 + $0x30] sm:$0xff]
    %v401 = vld [vmem:[#allocation8 + $0x38] sm:$0xff]
    %v402 = vld [vmem:[#allocation8 + $0x40] sm:$0xff]
    %v403 = vld [vmem:[#allocation8 + $0x48] sm:$0xff]
    %v404 = vld [vmem:[#allocation8 + $0x50] sm:$0xff]
    %v405 = vld [vmem:[#allocation8 + $0x58] sm:$0xff]
    %v406 = vld [vmem:[#allocation8 + $0x60] sm:$0xff]
    %v407 = vld [vmem:[#allocation8 + $0x68] sm:$0xff]
    %v408 = vld [vmem:[#allocation8 + $0x70] sm:$0xff]
    %v409 = vld [vmem:[#allocation8 + $0x78] sm:$0xff]
    %v410 = vmul.f32 %v378, %v394
    %v411 = vmul.f32 %v379, %v395
    %v412 = vmul.f32 %v380, %v396
    %v413 = vmul.f32 %v381, %v397
    %v414 = vmul.f32 %v382, %v398
    %v415 = vmul.f32 %v383, %v399
    %v416 = vmul.f32 %v384, %v400
    %v417 = vmul.f32 %v385, %v401
    %v418 = vmul.f32 %v386, %v402
    %v419 = vmul.f32 %v387, %v403
    %v420 = vmul.f32 %v388, %v404
    %v421 = vmul.f32 %v389, %v405
    %v422 = vmul.f32 %v390, %v406
    %v423 = vmul.f32 %v391, %v407
    %v424 = vmul.f32 %v392, %v408
    %v425 = vmul.f32 %v393, %v409
    %v426 = vadd.f32 %v218, %v410
    %v427 = vadd.f32 %v219, %v411
    %v428 = vadd.f32 %v220, %v412
    %v429 = vadd.f32 %v221, %v413
    %v430 = vadd.f32 %v222, %v414
    %v431 = vadd.f32 %v223, %v415
    %v432 = vadd.f32 %v224, %v416
    %v433 = vadd.f32 %v225, %v417
    %v434 = vadd.f32 %v226, %v418
    %v435 = vadd.f32 %v227, %v419
    %v436 = vadd.f32 %v228, %v420
    %v437 = vadd.f32 %v229, %v421
    %v438 = vadd.f32 %v230, %v422
    %v439 = vadd.f32 %v231, %v423
    %v440 = vadd.f32 %v232, %v424
    %v441 = vadd.f32 %v233, %v425
    %v442 = vld [vmem:[%s4] sm:$0x1]
    %v443 = vld [vmem:[%s5] sm:$0x1]
    %v444 = vmax.f32 %v443, 0.0
    %v445 = vand.u32 2147483647, %v443
    %v446 = vsub.f32 0.0, %v445
    %v447 = vmul.f32 %v446, 1.442695
    %v448 = vpow.pop %v447
    %v449 = vadd.f32 %v448, 1.0
    %v450 = vlog2.pop %v449
    %v451 = vmul.f32 %v450, 0.6931472
    %v452 = vadd.f32 %v444, %v451
    %v453 = vld [vmem:[%s6] sm:$0x1]
    %v454 = vmul.f32 %v452, %v453
    %v455 = vadd.f32 %v442, %v454
    %v457 = vperm.slane %v455, 0
    %459 = vmatpush.xpose.msra.mxu0 %v441
    %460 = vmatpush.xpose.msra.mxu0 %v440
    %461 = vmatpush.xpose.msra.mxu0 %v439
    %462 = vmatpush.xpose.msra.mxu0 %v438
    %463 = vmatpush.xpose.msra.mxu0 %v437
    %464 = vmatpush.xpose.msra.mxu0 %v436
    %465 = vmatpush.xpose.msra.mxu0 %v435
    %466 = vmatpush.xpose.msra.mxu0 %v434
    %467 = vmatpush.xpose.msra.mxu0 %v433
    %468 = vmatpush.xpose.msra.mxu0 %v432
    %469 = vmatpush.xpose.msra.mxu0 %v431
    %470 = vmatpush.xpose.msra.mxu0 %v430
    %471 = vmatpush.xpose.msra.mxu0 %v429
    %472 = vmatpush.xpose.msra.mxu0 %v428
    %473 = vmatpush.xpose.msra.mxu0 %v427
    %474 = vmatpush.xpose.msra.mxu0 %v426
    %475 = vmatmul.f32.gmra.mxu0 %v217
    %v476 = vpop.f32.mrf.mxu0
    %v477 = vadd.f32 %v457, %v476
    %478 = vdwg.mxu0
    %v479 = vtanh.pop %v477
    %v480 = vld [vmem:[#allocation10] sm:$0xff]
    %v481 = vld [vmem:[#allocation10 + $0x8] sm:$0xff]
    %v482 = vld [vmem:[#allocation10 + $0x10] sm:$0xff]
    %v483 = vld [vmem:[#allocation10 + $0x18] sm:$0xff]
    %v484 = vld [vmem:[#allocation10 + $0x20] sm:$0xff]
    %v485 = vld [vmem:[#allocation10 + $0x28] sm:$0xff]
    %v486 = vld [vmem:[#allocation10 + $0x30] sm:$0xff]
    %v487 = vld [vmem:[#allocation10 + $0x38] sm:$0xff]
    %v488 = vld [vmem:[#allocation10 + $0x40] sm:$0xff]
    %v489 = vld [vmem:[#allocation10 + $0x48] sm:$0xff]
    %v490 = vld [vmem:[#allocation10 + $0x50] sm:$0xff]
    %v491 = vld [vmem:[#allocation10 + $0x58] sm:$0xff]
    %v492 = vld [vmem:[#allocation10 + $0x60] sm:$0xff]
    %v493 = vld [vmem:[#allocation10 + $0x68] sm:$0xff]
    %v494 = vld [vmem:[#allocation10 + $0x70] sm:$0xff]
    %v495 = vld [vmem:[#allocation10 + $0x78] sm:$0xff]
    %v496 = vld [vmem:[#allocation11] sm:$0xff]
    %v497 = vld [vmem:[#allocation11 + $0x8] sm:$0xff]
    %v498 = vld [vmem:[#allocation11 + $0x10] sm:$0xff]
    %v499 = vld [vmem:[#allocation11 + $0x18] sm:$0xff]
    %v500 = vld [vmem:[#allocation11 + $0x20] sm:$0xff]
    %v501 = vld [vmem:[#allocation11 + $0x28] sm:$0xff]
    %v502 = vld [vmem:[#allocation11 + $0x30] sm:$0xff]
    %v503 = vld [vmem:[#allocation11 + $0x38] sm:$0xff]
    %v504 = vld [vmem:[#allocation11 + $0x40] sm:$0xff]
    %v505 = vld [vmem:[#allocation11 + $0x48] sm:$0xff]
    %v506 = vld [vmem:[#allocation11 + $0x50] sm:$0xff]
    %v507 = vld [vmem:[#allocation11 + $0x58] sm:$0xff]
    %v508 = vld [vmem:[#allocation11 + $0x60] sm:$0xff]
    %v509 = vld [vmem:[#allocation11 + $0x68] sm:$0xff]
    %v510 = vld [vmem:[#allocation11 + $0x70] sm:$0xff]
    %v511 = vld [vmem:[#allocation11 + $0x78] sm:$0xff]
    %v512 = vmax.f32 %v496, 0.0
    %v513 = vmax.f32 %v497, 0.0
    %v514 = vmax.f32 %v498, 0.0
    %v515 = vmax.f32 %v499, 0.0
    %v516 = vmax.f32 %v500, 0.0
    %v517 = vmax.f32 %v501, 0.0
    %v518 = vmax.f32 %v502, 0.0
    %v519 = vmax.f32 %v503, 0.0
    %v520 = vmax.f32 %v504, 0.0
    %v521 = vmax.f32 %v505, 0.0
    %v522 = vmax.f32 %v506, 0.0
    %v523 = vmax.f32 %v507, 0.0
    %v524 = vmax.f32 %v508, 0.0
    %v525 = vmax.f32 %v509, 0.0
    %v526 = vmax.f32 %v510, 0.0
    %v527 = vmax.f32 %v511, 0.0
    %v528 = vand.u32 2147483647, %v496
    %v529 = vand.u32 2147483647, %v497
    %v530 = vand.u32 2147483647, %v498
    %v531 = vand.u32 2147483647, %v499
    %v532 = vand.u32 2147483647, %v500
    %v533 = vand.u32 2147483647, %v501
    %v534 = vand.u32 2147483647, %v502
    %v535 = vand.u32 2147483647, %v503
    %v536 = vand.u32 2147483647, %v504
    %v537 = vand.u32 2147483647, %v505
    %v538 = vand.u32 2147483647, %v506
    %v539 = vand.u32 2147483647, %v507
    %v540 = vand.u32 2147483647, %v508
    %v541 = vand.u32 2147483647, %v509
    %v542 = vand.u32 2147483647, %v510
    %v543 = vand.u32 2147483647, %v511
    %v544 = vsub.f32 0.0, %v528
    %v545 = vsub.f32 0.0, %v529
    %v546 = vsub.f32 0.0, %v530
    %v547 = vsub.f32 0.0, %v531
    %v548 = vsub.f32 0.0, %v532
    %v549 = vsub.f32 0.0, %v533
    %v550 = vsub.f32 0.0, %v534
    %v551 = vsub.f32 0.0, %v535
    %v552 = vsub.f32 0.0, %v536
    %v553 = vsub.f32 0.0, %v537
    %v554 = vsub.f32 0.0, %v538
    %v555 = vsub.f32 0.0, %v539
    %v556 = vsub.f32 0.0, %v540
    %v557 = vsub.f32 0.0, %v541
    %v558 = vsub.f32 0.0, %v542
    %v559 = vsub.f32 0.0, %v543
    %v560 = vmul.f32 %v544, 1.442695
    %v561 = vpow.pop %v560
    %v562 = vmul.f32 %v545, 1.442695
    %v563 = vpow.pop %v562
    %v564 = vmul.f32 %v546, 1.442695
    %v565 = vpow.pop %v564
    %v566 = vmul.f32 %v547, 1.442695
    %v567 = vpow.pop %v566
    %v568 = vmul.f32 %v548, 1.442695
    %v569 = vpow.pop %v568
    %v570 = vmul.f32 %v549, 1.442695
    %v571 = vpow.pop %v570
    %v572 = vmul.f32 %v550, 1.442695
    %v573 = vpow.pop %v572
    %v574 = vmul.f32 %v551, 1.442695
    %v575 = vpow.pop %v574
    %v576 = vmul.f32 %v552, 1.442695
    %v577 = vpow.pop %v576
    %v578 = vmul.f32 %v553, 1.442695
    %v579 = vpow.pop %v578
    %v580 = vmul.f32 %v554, 1.442695
    %v581 = vpow.pop %v580
    %v582 = vmul.f32 %v555, 1.442695
    %v583 = vpow.pop %v582
    %v584 = vmul.f32 %v556, 1.442695
    %v585 = vpow.pop %v584
    %v586 = vmul.f32 %v557, 1.442695
    %v587 = vpow.pop %v586
    %v588 = vmul.f32 %v558, 1.442695
    %v589 = vpow.pop %v588
    %v590 = vmul.f32 %v559, 1.442695
    %v591 = vpow.pop %v590
    %v592 = vadd.f32 %v561, 1.0
    %v593 = vadd.f32 %v563, 1.0
    %v594 = vadd.f32 %v565, 1.0
    %v595 = vadd.f32 %v567, 1.0
    %v596 = vadd.f32 %v569, 1.0
    %v597 = vadd.f32 %v571, 1.0
    %v598 = vadd.f32 %v573, 1.0
    %v599 = vadd.f32 %v575, 1.0
    %v600 = vadd.f32 %v577, 1.0
    %v601 = vadd.f32 %v579, 1.0
    %v602 = vadd.f32 %v581, 1.0
    %v603 = vadd.f32 %v583, 1.0
    %v604 = vadd.f32 %v585, 1.0
    %v605 = vadd.f32 %v587, 1.0
    %v606 = vadd.f32 %v589, 1.0
    %v607 = vadd.f32 %v591, 1.0
    %v608 = vlog2.pop %v592
    %v609 = vmul.f32 %v608, 0.6931472
    %v610 = vlog2.pop %v593
    %v611 = vmul.f32 %v610, 0.6931472
    %v612 = vlog2.pop %v594
    %v613 = vmul.f32 %v612, 0.6931472
    %v614 = vlog2.pop %v595
    %v615 = vmul.f32 %v614, 0.6931472
    %v616 = vlog2.pop %v596
    %v617 = vmul.f32 %v616, 0.6931472
    %v618 = vlog2.pop %v597
    %v619 = vmul.f32 %v618, 0.6931472
    %v620 = vlog2.pop %v598
    %v621 = vmul.f32 %v620, 0.6931472
    %v622 = vlog2.pop %v599
    %v623 = vmul.f32 %v622, 0.6931472
    %v624 = vlog2.pop %v600
    %v625 = vmul.f32 %v624, 0.6931472
    %v626 = vlog2.pop %v601
    %v627 = vmul.f32 %v626, 0.6931472
    %v628 = vlog2.pop %v602
    %v629 = vmul.f32 %v628, 0.6931472
    %v630 = vlog2.pop %v603
    %v631 = vmul.f32 %v630, 0.6931472
    %v632 = vlog2.pop %v604
    %v633 = vmul.f32 %v632, 0.6931472
    %v634 = vlog2.pop %v605
    %v635 = vmul.f32 %v634, 0.6931472
    %v636 = vlog2.pop %v606
    %v637 = vmul.f32 %v636, 0.6931472
    %v638 = vlog2.pop %v607
    %v639 = vmul.f32 %v638, 0.6931472
    %v640 = vadd.f32 %v512, %v609
    %v641 = vadd.f32 %v513, %v611
    %v642 = vadd.f32 %v514, %v613
    %v643 = vadd.f32 %v515, %v615
    %v644 = vadd.f32 %v516, %v617
    %v645 = vadd.f32 %v517, %v619
    %v646 = vadd.f32 %v518, %v621
    %v647 = vadd.f32 %v519, %v623
    %v648 = vadd.f32 %v520, %v625
    %v649 = vadd.f32 %v521, %v627
    %v650 = vadd.f32 %v522, %v629
    %v651 = vadd.f32 %v523, %v631
    %v652 = vadd.f32 %v524, %v633
    %v653 = vadd.f32 %v525, %v635
    %v654 = vadd.f32 %v526, %v637
    %v655 = vadd.f32 %v527, %v639
    %v656 = vld [vmem:[#allocation13] sm:$0xff]
    %v657 = vld [vmem:[#allocation13 + $0x8] sm:$0xff]
    %v658 = vld [vmem:[#allocation13 + $0x10] sm:$0xff]
    %v659 = vld [vmem:[#allocation13 + $0x18] sm:$0xff]
    %v660 = vld [vmem:[#allocation13 + $0x20] sm:$0xff]
    %v661 = vld [vmem:[#allocation13 + $0x28] sm:$0xff]
    %v662 = vld [vmem:[#allocation13 + $0x30] sm:$0xff]
    %v663 = vld [vmem:[#allocation13 + $0x38] sm:$0xff]
    %v664 = vld [vmem:[#allocation13 + $0x40] sm:$0xff]
    %v665 = vld [vmem:[#allocation13 + $0x48] sm:$0xff]
    %v666 = vld [vmem:[#allocation13 + $0x50] sm:$0xff]
    %v667 = vld [vmem:[#allocation13 + $0x58] sm:$0xff]
    %v668 = vld [vmem:[#allocation13 + $0x60] sm:$0xff]
    %v669 = vld [vmem:[#allocation13 + $0x68] sm:$0xff]
    %v670 = vld [vmem:[#allocation13 + $0x70] sm:$0xff]
    %v671 = vld [vmem:[#allocation13 + $0x78] sm:$0xff]
    %v672 = vmul.f32 %v640, %v656
    %v673 = vmul.f32 %v641, %v657
    %v674 = vmul.f32 %v642, %v658
    %v675 = vmul.f32 %v643, %v659
    %v676 = vmul.f32 %v644, %v660
    %v677 = vmul.f32 %v645, %v661
    %v678 = vmul.f32 %v646, %v662
    %v679 = vmul.f32 %v647, %v663
    %v680 = vmul.f32 %v648, %v664
    %v681 = vmul.f32 %v649, %v665
    %v682 = vmul.f32 %v650, %v666
    %v683 = vmul.f32 %v651, %v667
    %v684 = vmul.f32 %v652, %v668
    %v685 = vmul.f32 %v653, %v669
    %v686 = vmul.f32 %v654, %v670
    %v687 = vmul.f32 %v655, %v671
    %v688 = vadd.f32 %v480, %v672
    %v689 = vadd.f32 %v481, %v673
    %v690 = vadd.f32 %v482, %v674
    %v691 = vadd.f32 %v483, %v675
    %v692 = vadd.f32 %v484, %v676
    %v693 = vadd.f32 %v485, %v677
    %v694 = vadd.f32 %v486, %v678
    %v695 = vadd.f32 %v487, %v679
    %v696 = vadd.f32 %v488, %v680
    %v697 = vadd.f32 %v489, %v681
    %v698 = vadd.f32 %v490, %v682
    %v699 = vadd.f32 %v491, %v683
    %v700 = vadd.f32 %v492, %v684
    %v701 = vadd.f32 %v493, %v685
    %v702 = vadd.f32 %v494, %v686
    %v703 = vadd.f32 %v495, %v687
    %v704 = vld [vmem:[%s10] sm:$0x1]
    %v705 = vld [vmem:[%s11] sm:$0x1]
    %v706 = vmax.f32 %v705, 0.0
    %v707 = vand.u32 2147483647, %v705
    %v708 = vsub.f32 0.0, %v707
    %v709 = vmul.f32 %v708, 1.442695
    %v710 = vpow.pop %v709
    %v711 = vadd.f32 %v710, 1.0
    %v712 = vlog2.pop %v711
    %v713 = vmul.f32 %v712, 0.6931472
    %v714 = vadd.f32 %v706, %v713
    %v715 = vld [vmem:[%s12] sm:$0x1]
    %v716 = vmul.f32 %v714, %v715
    %v717 = vadd.f32 %v704, %v716
    %v719 = vperm.slane %v717, 0
    %721 = vmatpush.xpose.msra.mxu0 %v703
    %722 = vmatpush.xpose.msra.mxu0 %v702
    %723 = vmatpush.xpose.msra.mxu0 %v701
    %724 = vmatpush.xpose.msra.mxu0 %v700
    %725 = vmatpush.xpose.msra.mxu0 %v699
    %726 = vmatpush.xpose.msra.mxu0 %v698
    %727 = vmatpush.xpose.msra.mxu0 %v697
    %728 = vmatpush.xpose.msra.mxu0 %v696
    %729 = vmatpush.xpose.msra.mxu0 %v695
    %730 = vmatpush.xpose.msra.mxu0 %v694
    %731 = vmatpush.xpose.msra.mxu0 %v693
    %732 = vmatpush.xpose.msra.mxu0 %v692
    %733 = vmatpush.xpose.msra.mxu0 %v691
    %734 = vmatpush.xpose.msra.mxu0 %v690
    %735 = vmatpush.xpose.msra.mxu0 %v689
    %736 = vmatpush.xpose.msra.mxu0 %v688
    %737 = vmatmul.f32.gmra.mxu0 %v479
    %v738 = vpop.f32.mrf.mxu0
    %v739 = vadd.f32 %v719, %v738
    %740 = vdwg.mxu0
    %v741 = vtanh.pop %v739
    %v742 = vld [vmem:[#allocation14] sm:$0xff]
    %v743 = vld [vmem:[#allocation14 + $0x8] sm:$0xff]
    %v744 = vld [vmem:[#allocation14 + $0x10] sm:$0xff]
    %v745 = vld [vmem:[#allocation14 + $0x18] sm:$0xff]
    %v746 = vld [vmem:[#allocation14 + $0x20] sm:$0xff]
    %v747 = vld [vmem:[#allocation14 + $0x28] sm:$0xff]
    %v748 = vld [vmem:[#allocation14 + $0x30] sm:$0xff]
    %v749 = vld [vmem:[#allocation14 + $0x38] sm:$0xff]
    %v750 = vld [vmem:[#allocation14 + $0x40] sm:$0xff]
    %v751 = vld [vmem:[#allocation14 + $0x48] sm:$0xff]
    %v752 = vld [vmem:[#allocation14 + $0x50] sm:$0xff]
    %v753 = vld [vmem:[#allocation14 + $0x58] sm:$0xff]
    %v754 = vld [vmem:[#allocation14 + $0x60] sm:$0xff]
    %v755 = vld [vmem:[#allocation14 + $0x68] sm:$0xff]
    %v756 = vld [vmem:[#allocation14 + $0x70] sm:$0xff]
    %v757 = vld [vmem:[#allocation14 + $0x78] sm:$0xff]
    %v758 = vld [vmem:[#allocation16] sm:$0xff]
    %v759 = vld [vmem:[#allocation16 + $0x8] sm:$0xff]
    %v760 = vld [vmem:[#allocation16 + $0x10] sm:$0xff]
    %v761 = vld [vmem:[#allocation16 + $0x18] sm:$0xff]
    %v762 = vld [vmem:[#allocation16 + $0x20] sm:$0xff]
    %v763 = vld [vmem:[#allocation16 + $0x28] sm:$0xff]
    %v764 = vld [vmem:[#allocation16 + $0x30] sm:$0xff]
    %v765 = vld [vmem:[#allocation16 + $0x38] sm:$0xff]
    %v766 = vld [vmem:[#allocation16 + $0x40] sm:$0xff]
    %v767 = vld [vmem:[#allocation16 + $0x48] sm:$0xff]
    %v768 = vld [vmem:[#allocation16 + $0x50] sm:$0xff]
    %v769 = vld [vmem:[#allocation16 + $0x58] sm:$0xff]
    %v770 = vld [vmem:[#allocation16 + $0x60] sm:$0xff]
    %v771 = vld [vmem:[#allocation16 + $0x68] sm:$0xff]
    %v772 = vld [vmem:[#allocation16 + $0x70] sm:$0xff]
    %v773 = vld [vmem:[#allocation16 + $0x78] sm:$0xff]
    %v774 = vmax.f32 %v758, 0.0
    %v775 = vmax.f32 %v759, 0.0
    %v776 = vmax.f32 %v760, 0.0
    %v777 = vmax.f32 %v761, 0.0
    %v778 = vmax.f32 %v762, 0.0
    %v779 = vmax.f32 %v763, 0.0
    %v780 = vmax.f32 %v764, 0.0
    %v781 = vmax.f32 %v765, 0.0
    %v782 = vmax.f32 %v766, 0.0
    %v783 = vmax.f32 %v767, 0.0
    %v784 = vmax.f32 %v768, 0.0
    %v785 = vmax.f32 %v769, 0.0
    %v786 = vmax.f32 %v770, 0.0
    %v787 = vmax.f32 %v771, 0.0
    %v788 = vmax.f32 %v772, 0.0
    %v789 = vmax.f32 %v773, 0.0
    %v790 = vand.u32 2147483647, %v758
    %v791 = vand.u32 2147483647, %v759
    %v792 = vand.u32 2147483647, %v760
    %v793 = vand.u32 2147483647, %v761
    %v794 = vand.u32 2147483647, %v762
    %v795 = vand.u32 2147483647, %v763
    %v796 = vand.u32 2147483647, %v764
    %v797 = vand.u32 2147483647, %v765
    %v798 = vand.u32 2147483647, %v766
    %v799 = vand.u32 2147483647, %v767
    %v800 = vand.u32 2147483647, %v768
    %v801 = vand.u32 2147483647, %v769
    %v802 = vand.u32 2147483647, %v770
    %v803 = vand.u32 2147483647, %v771
    %v804 = vand.u32 2147483647, %v772
    %v805 = vand.u32 2147483647, %v773
    %v806 = vsub.f32 0.0, %v790
    %v807 = vsub.f32 0.0, %v791
    %v808 = vsub.f32 0.0, %v792
    %v809 = vsub.f32 0.0, %v793
    %v810 = vsub.f32 0.0, %v794
    %v811 = vsub.f32 0.0, %v795
    %v812 = vsub.f32 0.0, %v796
    %v813 = vsub.f32 0.0, %v797
    %v814 = vsub.f32 0.0, %v798
    %v815 = vsub.f32 0.0, %v799
    %v816 = vsub.f32 0.0, %v800
    %v817 = vsub.f32 0.0, %v801
    %v818 = vsub.f32 0.0, %v802
    %v819 = vsub.f32 0.0, %v803
    %v820 = vsub.f32 0.0, %v804
    %v821 = vsub.f32 0.0, %v805
    %v822 = vmul.f32 %v806, 1.442695
    %v823 = vpow.pop %v822
    %v824 = vmul.f32 %v807, 1.442695
    %v825 = vpow.pop %v824
    %v826 = vmul.f32 %v808, 1.442695
    %v827 = vpow.pop %v826
    %v828 = vmul.f32 %v809, 1.442695
    %v829 = vpow.pop %v828
    %v830 = vmul.f32 %v810, 1.442695
    %v831 = vpow.pop %v830
    %v832 = vmul.f32 %v811, 1.442695
    %v833 = vpow.pop %v832
    %v834 = vmul.f32 %v812, 1.442695
    %v835 = vpow.pop %v834
    %v836 = vmul.f32 %v813, 1.442695
    %v837 = vpow.pop %v836
    %v838 = vmul.f32 %v814, 1.442695
    %v839 = vpow.pop %v838
    %v840 = vmul.f32 %v815, 1.442695
    %v841 = vpow.pop %v840
    %v842 = vmul.f32 %v816, 1.442695
    %v843 = vpow.pop %v842
    %v844 = vmul.f32 %v817, 1.442695
    %v845 = vpow.pop %v844
    %v846 = vmul.f32 %v818, 1.442695
    %v847 = vpow.pop %v846
    %v848 = vmul.f32 %v819, 1.442695
    %v849 = vpow.pop %v848
    %v850 = vmul.f32 %v820, 1.442695
    %v851 = vpow.pop %v850
    %v852 = vmul.f32 %v821, 1.442695
    %v853 = vpow.pop %v852
    %v854 = vadd.f32 %v823, 1.0
    %v855 = vadd.f32 %v825, 1.0
    %v856 = vadd.f32 %v827, 1.0
    %v857 = vadd.f32 %v829, 1.0
    %v858 = vadd.f32 %v831, 1.0
    %v859 = vadd.f32 %v833, 1.0
    %v860 = vadd.f32 %v835, 1.0
    %v861 = vadd.f32 %v837, 1.0
    %v862 = vadd.f32 %v839, 1.0
    %v863 = vadd.f32 %v841, 1.0
    %v864 = vadd.f32 %v843, 1.0
    %v865 = vadd.f32 %v845, 1.0
    %v866 = vadd.f32 %v847, 1.0
    %v867 = vadd.f32 %v849, 1.0
    %v868 = vadd.f32 %v851, 1.0
    %v869 = vadd.f32 %v853, 1.0
    %v870 = vlog2.pop %v854
    %v871 = vmul.f32 %v870, 0.6931472
    %v872 = vlog2.pop %v855
    %v873 = vmul.f32 %v872, 0.6931472
    %v874 = vlog2.pop %v856
    %v875 = vmul.f32 %v874, 0.6931472
    %v876 = vlog2.pop %v857
    %v877 = vmul.f32 %v876, 0.6931472
    %v878 = vlog2.pop %v858
    %v879 = vmul.f32 %v878, 0.6931472
    %v880 = vlog2.pop %v859
    %v881 = vmul.f32 %v880, 0.6931472
    %v882 = vlog2.pop %v860
    %v883 = vmul.f32 %v882, 0.6931472
    %v884 = vlog2.pop %v861
    %v885 = vmul.f32 %v884, 0.6931472
    %v886 = vlog2.pop %v862
    %v887 = vmul.f32 %v886, 0.6931472
    %v888 = vlog2.pop %v863
    %v889 = vmul.f32 %v888, 0.6931472
    %v890 = vlog2.pop %v864
    %v891 = vmul.f32 %v890, 0.6931472
    %v892 = vlog2.pop %v865
    %v893 = vmul.f32 %v892, 0.6931472
    %v894 = vlog2.pop %v866
    %v895 = vmul.f32 %v894, 0.6931472
    %v896 = vlog2.pop %v867
    %v897 = vmul.f32 %v896, 0.6931472
    %v898 = vlog2.pop %v868
    %v899 = vmul.f32 %v898, 0.6931472
    %v900 = vlog2.pop %v869
    %v901 = vmul.f32 %v900, 0.6931472
    %v902 = vadd.f32 %v774, %v871
    %v903 = vadd.f32 %v775, %v873
    %v904 = vadd.f32 %v776, %v875
    %v905 = vadd.f32 %v777, %v877
    %v906 = vadd.f32 %v778, %v879
    %v907 = vadd.f32 %v779, %v881
    %v908 = vadd.f32 %v780, %v883
    %v909 = vadd.f32 %v781, %v885
    %v910 = vadd.f32 %v782, %v887
    %v911 = vadd.f32 %v783, %v889
    %v912 = vadd.f32 %v784, %v891
    %v913 = vadd.f32 %v785, %v893
    %v914 = vadd.f32 %v786, %v895
    %v915 = vadd.f32 %v787, %v897
    %v916 = vadd.f32 %v788, %v899
    %v917 = vadd.f32 %v789, %v901
    %v918 = vld [vmem:[#allocation17] sm:$0xff]
    %v919 = vld [vmem:[#allocation17 + $0x8] sm:$0xff]
    %v920 = vld [vmem:[#allocation17 + $0x10] sm:$0xff]
    %v921 = vld [vmem:[#allocation17 + $0x18] sm:$0xff]
    %v922 = vld [vmem:[#allocation17 + $0x20] sm:$0xff]
    %v923 = vld [vmem:[#allocation17 + $0x28] sm:$0xff]
    %v924 = vld [vmem:[#allocation17 + $0x30] sm:$0xff]
    %v925 = vld [vmem:[#allocation17 + $0x38] sm:$0xff]
    %v926 = vld [vmem:[#allocation17 + $0x40] sm:$0xff]
    %v927 = vld [vmem:[#allocation17 + $0x48] sm:$0xff]
    %v928 = vld [vmem:[#allocation17 + $0x50] sm:$0xff]
    %v929 = vld [vmem:[#allocation17 + $0x58] sm:$0xff]
    %v930 = vld [vmem:[#allocation17 + $0x60] sm:$0xff]
    %v931 = vld [vmem:[#allocation17 + $0x68] sm:$0xff]
    %v932 = vld [vmem:[#allocation17 + $0x70] sm:$0xff]
    %v933 = vld [vmem:[#allocation17 + $0x78] sm:$0xff]
    %v934 = vmul.f32 %v902, %v918
    %v935 = vmul.f32 %v903, %v919
    %v936 = vmul.f32 %v904, %v920
    %v937 = vmul.f32 %v905, %v921
    %v938 = vmul.f32 %v906, %v922
    %v939 = vmul.f32 %v907, %v923
    %v940 = vmul.f32 %v908, %v924
    %v941 = vmul.f32 %v909, %v925
    %v942 = vmul.f32 %v910, %v926
    %v943 = vmul.f32 %v911, %v927
    %v944 = vmul.f32 %v912, %v928
    %v945 = vmul.f32 %v913, %v929
    %v946 = vmul.f32 %v914, %v930
    %v947 = vmul.f32 %v915, %v931
    %v948 = vmul.f32 %v916, %v932
    %v949 = vmul.f32 %v917, %v933
    %v950 = vadd.f32 %v742, %v934
    %v951 = vadd.f32 %v743, %v935
    %v952 = vadd.f32 %v744, %v936
    %v953 = vadd.f32 %v745, %v937
    %v954 = vadd.f32 %v746, %v938
    %v955 = vadd.f32 %v747, %v939
    %v956 = vadd.f32 %v748, %v940
    %v957 = vadd.f32 %v749, %v941
    %v958 = vadd.f32 %v750, %v942
    %v959 = vadd.f32 %v751, %v943
    %v960 = vadd.f32 %v752, %v944
    %v961 = vadd.f32 %v753, %v945
    %v962 = vadd.f32 %v754, %v946
    %v963 = vadd.f32 %v755, %v947
    %v964 = vadd.f32 %v756, %v948
    %v965 = vadd.f32 %v757, %v949
    %v966 = vld [vmem:[%s16] sm:$0x1]
    %v967 = vld [vmem:[%s17] sm:$0x1]
    %v968 = vmax.f32 %v967, 0.0
    %v969 = vand.u32 2147483647, %v967
    %v970 = vsub.f32 0.0, %v969
    %v971 = vmul.f32 %v970, 1.442695
    %v972 = vpow.pop %v971
    %v973 = vadd.f32 %v972, 1.0
    %v974 = vlog2.pop %v973
    %v975 = vmul.f32 %v974, 0.6931472
    %v976 = vadd.f32 %v968, %v975
    %v977 = vld [vmem:[%s18] sm:$0x1]
    %v978 = vmul.f32 %v976, %v977
    %v979 = vadd.f32 %v966, %v978
    %v981 = vperm.slane %v979, 0
    %983 = vmatpush.xpose.msra.mxu0 %v965
    %984 = vmatpush.xpose.msra.mxu0 %v964
    %985 = vmatpush.xpose.msra.mxu0 %v963
    %986 = vmatpush.xpose.msra.mxu0 %v962
    %987 = vmatpush.xpose.msra.mxu0 %v961
    %988 = vmatpush.xpose.msra.mxu0 %v960
    %989 = vmatpush.xpose.msra.mxu0 %v959
    %990 = vmatpush.xpose.msra.mxu0 %v958
    %991 = vmatpush.xpose.msra.mxu0 %v957
    %992 = vmatpush.xpose.msra.mxu0 %v956
    %993 = vmatpush.xpose.msra.mxu0 %v955
    %994 = vmatpush.xpose.msra.mxu0 %v954
    %995 = vmatpush.xpose.msra.mxu0 %v953
    %996 = vmatpush.xpose.msra.mxu0 %v952
    %997 = vmatpush.xpose.msra.mxu0 %v951
    %998 = vmatpush.xpose.msra.mxu0 %v950
    %999 = vmatmul.f32.gmra.mxu0 %v741
    %v1000 = vpop.f32.mrf.mxu0
    %v1001 = vadd.f32 %v981, %v1000
    %1002 = vdwg.mxu0
    %1003 = vst [vmem:[#allocation19] sm:$0xff] %v1001
    // Predicated region
    $region118: #{tpu_custom_call.1} parent=1 // pred_check
      _
    $region119: #{tpu_custom_call.1} parent=1 // pred_check_branch
      %1005 = sbr.rel (0) target = $region121
    $region120: #{tpu_custom_call.1} parent=1 // pred_region
      %1007 = vsyncadd [#allocation4], 0
      %s1009 = sshll.u32 [#allocation19], 4
      %s1010 = int_to_ptr.vmem [resolvable:$true] %s1009
      %s1011 = sshll.u32 %s19, 4
      %s1012 = int_to_ptr.hbm [resolvable:$true] %s1011
      %1014 = dma.vmem_to_hbm [thread:$0]  %s1010, 128, %s1012, [#allocation4]
    $region121: #{tpu_custom_call.1} parent=1 // pred_fallthru
      _
    // Predicated region
    $region122: #{tpu_custom_call.1} parent=1 // pred_check
      _
    $region123: #{tpu_custom_call.1} parent=1 // pred_check_branch
      %1016 = sbr.rel (0) target = $region125
    $region124: #{tpu_custom_call.1} parent=1 // pred_region
      %1018 = dma.done [#allocation4], 128
    $region125: #{tpu_custom_call.1} parent=1 // pred_fallthru
      _
    %1019 = vsyncpa [#allocation3], 1
    %1020 = vsyncpa [#allocation6], 1
    %1021 = vsyncpa [#allocation9], 1
    %1022 = vsyncpa [#allocation12], 1
    %1023 = vsyncpa [#allocation15], 1
    %1024 = vsyncpa [#allocation18], 1
    %1025 = vsyncpa [#allocation4], 1

</llo_original>
